<compile_context>
chip_gen: v5e
topology: v5e:2x2
jax: 0.10.0
libtpu: 0.0.40
codegen_flags: <defaults>
</compile_context>

<pallas_src>
import jax
import jax.numpy as jnp
from jax.experimental import pallas as pl
from jax.experimental.pallas import tpu as pltpu


def _round_up(x, m):
    return ((x + m - 1) // m) * m


def _vmem_budgets():
    """Per-generation VMEM budgets (bytes): (scoped limit, fused slab, tile)."""
    cap = 64 * 1024 * 1024          # conservative default = v7x (smallest VMEM)
    try:
        info = pltpu.get_tpu_info()
        for name in ("vmem_capacity_bytes", "vmem_size_bytes", "vmem_bytes"):
            v = getattr(info, name, None)
            if v:
                cap = int(v)
                break
    except Exception:
        pass
    vmem_limit = min((cap * 3) // 4, 112 * 1024 * 1024)   # ~48 MiB v7x, ~96 MiB v5e/v6e
    fused_budget = (vmem_limit * 3) // 4                  # double-buffered fused slab
    tile_budget = vmem_limit // 2                         # double-buffered HW tiles
    return vmem_limit, fused_budget, tile_budget


def _pick_tile_rows(n_rows, c, co, tile_budget):
    """Largest multiple-of-8 row tile (rows of 128 lanes) within the VMEM budget."""
    cap = max(8, _round_up(n_rows, 8))
    for t in (8192, 4096, 2048, 1024, 512, 256, 128, 64, 32, 16, 8):
        # 2x double-buffered (in + out) tiles + one f32 accumulator slab.
        if t <= cap and (2 * (c + co) + 1) * t * 128 * 4 <= tile_budget:
            return t
    return 8


def _gated_conv_fma(ws, bt, x_ref, o_ref):
    """out[o] = sum_k ws[o, k] * x[k] + bt[o] as dense per-channel VPU FMAs.

    ws: (Co, C) f32 with the gate already folded in, bt: (Co, 1) f32,
    x_ref: (C, R, 128) ref, o_ref: (Co, R, 128) ref.  The bias is folded into
    the first FMA and each output channel is stored immediately so only one
    (R, 128) f32 accumulator is live at a time.
    """
    co, c = ws.shape
    # TODO(synk): for large channel counts this unrolled VPU loop should route
    # through an MXU contraction; CSE_Block uses tiny C/Co so FMAs win here.
    for o in range(co):
        acc = ws[o:o + 1, 0:1] * x_ref[0].astype(jnp.float32) + bt[o:o + 1, 0:1]
        for k in range(1, c):
            acc = acc + ws[o:o + 1, k:k + 1] * x_ref[k].astype(jnp.float32)
        o_ref[o] = acc.astype(o_ref.dtype)


# --------------------------------------------------------------------------
# Fused path: pool + excitation MLP + gate-folded tail conv, one batch / step
# --------------------------------------------------------------------------
def _fused_kernel(x_ref, w1_ref, b1_ref, w2_ref, b2_ref, wt_ref, bt_ref, o_ref):
    # x_ref: (C, R, 128)  o_ref: (Co, R, 128)
    # w1_ref: (C, Cr) with the pooling 1/HW pre-folded, b1_ref: (1, Cr),
    # w2_ref: (Cr, C), b2_ref: (1, C), wt_ref: (Co, C), bt_ref: (Co, 1).
    c = x_ref.shape[0]
    cr = w2_ref.shape[0]

    # ---- squeeze: per-channel global sum (the mean's 1/HW lives in w1) ----
    parts = [jnp.sum(x_ref[k].astype(jnp.float32), keepdims=True) for k in range(c)]

    # ---- excitation MLP + sigmoid on tiny row vectors ----
    w1 = w1_ref[...]
    w2 = w2_ref[...]
    h1 = b1_ref[...]                                 # (1, Cr)
    for k in range(c):
        h1 = h1 + parts[k] * w1[k:k + 1, :]
    h1 = jnp.maximum(h1, 0.0)
    z = b2_ref[...]                                  # (1, C)
    for j in range(cr):
        z = z + h1[0:1, j:j + 1] * w2[j:j + 1, :]
    gate = 1.0 / (1.0 + jnp.exp(-z))                 # (1, C) sigmoid (EUP)

    # ---- tail 1x1 conv with the gate folded into the weights ----
    ws = wt_ref[...].astype(jnp.float32) * gate      # (Co, C)
    bt = bt_ref[...].astype(jnp.float32)             # (Co, 1)
    _gated_conv_fma(ws, bt, x_ref, o_ref)


# --------------------------------------------------------------------------
# Tiled fallback path (huge spatial extents that do not fit VMEM per batch)
# --------------------------------------------------------------------------
def _pool_kernel(x_ref, sum_ref):
    # x_ref: (C, TR, 128) tile   sum_ref: (C, 128) accumulator, resident over t.
    @pl.when(pl.program_id(2) == 0)
    def _():
        sum_ref[...] = jnp.zeros_like(sum_ref)

    c = sum_ref.shape[0]
    for k in range(c):
        sum_ref[pl.ds(k, 1), :] += jnp.sum(
            x_ref[k].astype(jnp.float32), axis=0, keepdims=True)


def _tail_kernel(ws_ref, bt_ref, x_ref, o_ref):
    # ws_ref: (Co, C) per-batch gate-folded weights, bt_ref: (Co, 1),
    # x_ref: (C, TR, 128), o_ref: (Co, TR, 128).
    _gated_conv_fma(ws_ref[...].astype(jnp.float32),
                    bt_ref[...].astype(jnp.float32), x_ref, o_ref)


def cse_block(x_nchw, w1, b1, w2, b2, wt, bt, *, force_tiled=False):
    """CSE_Block forward: out = Conv1x1_tail(sigmoid(MLP(gap(x))) * x).

    x_nchw: (N, C, H, W).  Squeeze/excite weights in matmul form: w1 (C, Cr),
    b1 (Cr,), w2 (Cr, C), b2 (C,).  Tail 1x1 conv: wt (Co, C), bt (Co,).
    Returns (N, Co, H, W).
    """
    N, C, H, W = x_nchw.shape
    Co = wt.shape[0]
    Cr = w1.shape[1]
    HW = H * W
    out_dtype = x_nchw.dtype
    itemsize = jnp.dtype(out_dtype).itemsize

    vmem_limit, fused_budget, tile_budget = _vmem_budgets()

    # Kernel-side parameter forms (f32; pooling 1/HW folded into w1).
    w1k = w1.astype(jnp.float32) * (1.0 / HW)          # (C, Cr)
    b1k = b1.astype(jnp.float32).reshape(1, Cr)
    w2k = w2.astype(jnp.float32)                       # (Cr, C)
    b2k = b2.astype(jnp.float32).reshape(1, C)
    wtk = wt.astype(jnp.float32)                       # (Co, C)
    btk = bt.astype(jnp.float32).reshape(Co, 1)

    x_flat = x_nchw.reshape(N, C, HW)

    hw128 = _round_up(HW, 128)
    # Fused-path working set: double-buffered (in + out) slabs + a few f32 temps.
    fused_bytes = 2 * (C + Co) * hw128 * itemsize + 4 * hw128 * 4

    if fused_bytes <= fused_budget and not force_tiled:
        # ------------------------- fused single-kernel path -------------------------
        if hw128 != HW:
            x_flat = jnp.pad(x_flat, ((0, 0), (0, 0), (0, hw128 - HW)))
        R = hw128 // 128
        x4 = x_flat.reshape(N, C, R, 128)

        out4 = pl.pallas_call(
            _fused_kernel,
            out_shape=jax.ShapeDtypeStruct((N, Co, R, 128), out_dtype),
            grid_spec=pltpu.PrefetchScalarGridSpec(
                num_scalar_prefetch=0,
                grid=(N,),
                in_specs=[
                    pl.BlockSpec((None, C, R, 128), lambda n: (n, 0, 0, 0)),  # x slab
                    pl.BlockSpec((C, Cr), lambda n: (0, 0)),                  # w1 (pre /HW)
                    pl.BlockSpec((1, Cr), lambda n: (0, 0)),                  # b1
                    pl.BlockSpec((Cr, C), lambda n: (0, 0)),                  # w2
                    pl.BlockSpec((1, C), lambda n: (0, 0)),                   # b2
                    pl.BlockSpec((Co, C), lambda n: (0, 0)),                  # tail weight
                    pl.BlockSpec((Co, 1), lambda n: (0, 0)),                  # tail bias
                ],
                out_specs=pl.BlockSpec((None, Co, R, 128), lambda n: (n, 0, 0, 0)),
            ),
            compiler_params=pltpu.CompilerParams(
                dimension_semantics=("parallel",),
                vmem_limit_bytes=vmem_limit,
            ),
        )(x4, w1k, b1k, w2k, b2k, wtk, btk)
        out_flat = out4.reshape(N, Co, hw128)
    else:
        # --------------------- tiled fallback (huge spatial extents) ---------------------
        tr = _pick_tile_rows(hw128 // 128, C, Co, tile_budget)
        hw_big = _round_up(HW, tr * 128)
        if hw_big != HW:
            x_flat = jnp.pad(x_flat, ((0, 0), (0, 0), (0, hw_big - HW)))
        R = hw_big // 128
        n_tiles = R // tr
        x4 = x_flat.reshape(N, C, R, 128)

        # Stage 1: per-channel partial sums accumulated over row tiles.  The
        # extra parallel chunk axis keeps both v7x TensorCores busy at N=1.
        n_chunks = 2 if (n_tiles % 2 == 0 and n_tiles >= 2) else 1
        tiles_per_chunk = n_tiles // n_chunks

        def pool_x_map(n, ch, t):
            return (n, 0, ch * tiles_per_chunk + t, 0)

        def pool_o_map(n, ch, t):
            return (n * n_chunks + ch, 0, 0)

        sums = pl.pallas_call(
            _pool_kernel,
            out_shape=jax.ShapeDtypeStruct((N * n_chunks, C, 128), jnp.float32),
            grid_spec=pltpu.PrefetchScalarGridSpec(
                num_scalar_prefetch=0,
                grid=(N, n_chunks, tiles_per_chunk),
                in_specs=[pl.BlockSpec((None, C, tr, 128), pool_x_map)],
                out_specs=pl.BlockSpec((None, C, 128), pool_o_map),
            ),
            compiler_params=pltpu.CompilerParams(
                dimension_semantics=("parallel", "parallel", "arbitrary"),
                vmem_limit_bytes=vmem_limit,
            ),
        )(x4)
        pooled = jnp.sum(sums.reshape(N, n_chunks, C, 128), axis=(1, 3)) * (1.0 / HW)

        # Stage 2: excitation MLP (tiny, off the critical path) in XLA; pre-fold
        # the gate into per-batch tail weights so the heavy pass has no filler.
        h1 = jnp.maximum(pooled @ w1.astype(jnp.float32) + b1k, 0.0)       # (N, Cr)
        gate = jax.nn.sigmoid(h1 @ w2k + b2k)                              # (N, C)
        ws = wtk[None, :, :] * gate[:, None, :]                            # (N, Co, C)

        # Stage 3: gate-folded tail 1x1 conv over big sublane-dense HW tiles.
        out4 = pl.pallas_call(
            _tail_kernel,
            out_shape=jax.ShapeDtypeStruct((N, Co, R, 128), out_dtype),
            grid_spec=pltpu.PrefetchScalarGridSpec(
                num_scalar_prefetch=0,
                grid=(N, n_tiles),
                in_specs=[
                    pl.BlockSpec((None, Co, C), lambda n, t: (n, 0, 0)),       # folded weights
                    pl.BlockSpec((Co, 1), lambda n, t: (0, 0)),                # tail bias
                    pl.BlockSpec((None, C, tr, 128), lambda n, t: (n, 0, t, 0)),
                ],
                out_specs=pl.BlockSpec((None, Co, tr, 128), lambda n, t: (n, 0, t, 0)),
            ),
            compiler_params=pltpu.CompilerParams(
                dimension_semantics=("parallel", "parallel"),
                vmem_limit_bytes=vmem_limit,
            ),
        )(ws, btk, x4)
        out_flat = out4.reshape(N, Co, hw_big)

    out_flat = out_flat[:, :, :HW]
    return out_flat.reshape(N, Co, H, W)


def _reference(x, w1, b1, w2, b2, wt, bt):
    # Pure-JAX reference of the PyTorch forward.
    pooled = jnp.mean(x, axis=(2, 3))                              # (N, C)
    h1 = jnp.maximum(pooled @ w1 + b1[None, :], 0.0)               # (N, Cr)
    gate = jax.nn.sigmoid(h1 @ w2 + b2[None, :])                   # (N, C)
    s = x * gate[:, :, None, None]                                 # (N, C, H, W)
    out = jnp.einsum("nchw,oc->nohw", s, wt) + bt[None, :, None, None]
    return out


if __name__ == "__main__":
    # Small shapes consistent with the module: in_ch=4, out_ch=4, r=2.
    N, C, H, W = 2, 4, 16, 16
    r = 2
    Cr = C // r
    Co = 4

    key = jax.random.PRNGKey(0)
    kx, k1, kb1, k2, kb2, kt, kbt = jax.random.split(key, 7)

    x = jax.random.normal(kx, (N, C, H, W), dtype=jnp.float32)

    # Deterministic synthetic parameters (1x1 conv weights as matrices).
    w1 = jax.random.normal(k1, (C, Cr), dtype=jnp.float32) * 0.5   # squeeze conv
    b1 = jax.random.normal(kb1, (Cr,), dtype=jnp.float32) * 0.1
    w2 = jax.random.normal(k2, (Cr, C), dtype=jnp.float32) * 0.5   # excite conv
    b2 = jax.random.normal(kb2, (C,), dtype=jnp.float32) * 0.1
    wt = jax.random.normal(kt, (Co, C), dtype=jnp.float32) * 0.5   # tail conv (Co, C)
    bt = jax.random.normal(kbt, (Co,), dtype=jnp.float32) * 0.1

    ref = _reference(x, w1, b1, w2, b2, wt, bt)

    run = jax.jit(cse_block, static_argnames=("force_tiled",))

    # Fused single-kernel path (the path real shapes take).
    out = jax.block_until_ready(run(x, w1, b1, w2, b2, wt, bt))
    assert out.shape == (N, Co, H, W), out.shape
    assert jnp.allclose(out, ref, atol=1e-4, rtol=1e-4), float(jnp.max(jnp.abs(out - ref)))

    # Tiled fallback path (exercised here for correctness coverage).
    out_t = jax.block_until_ready(run(x, w1, b1, w2, b2, wt, bt, force_tiled=True))
    assert jnp.allclose(out_t, ref, atol=1e-4, rtol=1e-4), float(jnp.max(jnp.abs(out_t - ref)))

    print("KERNEL_OK")
</pallas_src>

<mosaic_0001>
module attributes {stable_mosaic.version = 11 : i64} {
  func.func @_fused_kernel(%arg0: i32, %arg1: memref<1x4x2x128xf32, #tpu.memory_space<vmem>>, %arg2: memref<4x2xf32, #tpu.memory_space<vmem>>, %arg3: memref<1x2xf32, #tpu.memory_space<vmem>>, %arg4: memref<2x4xf32, #tpu.memory_space<vmem>>, %arg5: memref<1x4xf32, #tpu.memory_space<vmem>>, %arg6: memref<4x4xf32, #tpu.memory_space<vmem>>, %arg7: memref<4x1xf32, #tpu.memory_space<vmem>>, %arg8: memref<1x4x2x128xf32, #tpu.memory_space<vmem>>) attributes {dimension_semantics = [#tpu.dimension_semantics<parallel>], iteration_bounds = array<i64: 2>, scalar_prefetch = 0 : i64, scratch_operands = 0 : i64, tpu.core_type = #tpu.core_type<tc>, window_params = [{transform_indices = @transform_0, window_bounds = array<i64: 1, 4, 2, 128>}, {pipeline_mode = #tpu.pipeline_mode<synchronous>, transform_indices = @transform_1, window_bounds = array<i64: 4, 2>}, {pipeline_mode = #tpu.pipeline_mode<synchronous>, transform_indices = @transform_2, window_bounds = array<i64: 1, 2>}, {pipeline_mode = #tpu.pipeline_mode<synchronous>, transform_indices = @transform_3, window_bounds = array<i64: 2, 4>}, {pipeline_mode = #tpu.pipeline_mode<synchronous>, transform_indices = @transform_4, window_bounds = array<i64: 1, 4>}, {pipeline_mode = #tpu.pipeline_mode<synchronous>, transform_indices = @transform_5, window_bounds = array<i64: 4, 4>}, {pipeline_mode = #tpu.pipeline_mode<synchronous>, transform_indices = @transform_6, window_bounds = array<i64: 4, 1>}, {transform_indices = @transform_7, window_bounds = array<i64: 1, 4, 2, 128>}]} {
    %c0 = arith.constant 0 : index
    %c0_0 = arith.constant 0 : index
    %c0_1 = arith.constant 0 : index
    %c0_2 = arith.constant 0 : index
    %0 = vector.load %arg1[%c0, %c0_0, %c0_1, %c0_2] : memref<1x4x2x128xf32, #tpu.memory_space<vmem>>, vector<1x1x2x128xf32>
    %1 = vector.shape_cast %0 : vector<1x1x2x128xf32> to vector<2x128xf32>
    %2 = vector.shape_cast %1 : vector<2x128xf32> to vector<1x2x128xf32>
    %cst = arith.constant dense<0.000000e+00> : vector<1xf32>
    %3 = vector.multi_reduction <add>, %2, %cst [1, 2] : vector<1x2x128xf32> to vector<1xf32>
    %4 = vector.shape_cast %3 : vector<1xf32> to vector<1x1x1xf32>
    %5 = vector.extract %4[0, 0, 0] : f32 from vector<1x1x1xf32>
    %6 = vector.broadcast %5 : f32 to vector<1x1xf32>
    %c0_3 = arith.constant 0 : index
    %c1 = arith.constant 1 : index
    %c0_4 = arith.constant 0 : index
    %c0_5 = arith.constant 0 : index
    %7 = vector.load %arg1[%c0_3, %c1, %c0_4, %c0_5] : memref<1x4x2x128xf32, #tpu.memory_space<vmem>>, vector<1x1x2x128xf32>
    %8 = vector.shape_cast %7 : vector<1x1x2x128xf32> to vector<2x128xf32>
    %9 = vector.shape_cast %8 : vector<2x128xf32> to vector<1x2x128xf32>
    %cst_6 = arith.constant dense<0.000000e+00> : vector<1xf32>
    %10 = vector.multi_reduction <add>, %9, %cst_6 [1, 2] : vector<1x2x128xf32> to vector<1xf32>
    %11 = vector.shape_cast %10 : vector<1xf32> to vector<1x1x1xf32>
    %12 = vector.extract %11[0, 0, 0] : f32 from vector<1x1x1xf32>
    %13 = vector.broadcast %12 : f32 to vector<1x1xf32>
    %c0_7 = arith.constant 0 : index
    %c2 = arith.constant 2 : index
    %c0_8 = arith.constant 0 : index
    %c0_9 = arith.constant 0 : index
    %14 = vector.load %arg1[%c0_7, %c2, %c0_8, %c0_9] : memref<1x4x2x128xf32, #tpu.memory_space<vmem>>, vector<1x1x2x128xf32>
    %15 = vector.shape_cast %14 : vector<1x1x2x128xf32> to vector<2x128xf32>
    %16 = vector.shape_cast %15 : vector<2x128xf32> to vector<1x2x128xf32>
    %cst_10 = arith.constant dense<0.000000e+00> : vector<1xf32>
    %17 = vector.multi_reduction <add>, %16, %cst_10 [1, 2] : vector<1x2x128xf32> to vector<1xf32>
    %18 = vector.shape_cast %17 : vector<1xf32> to vector<1x1x1xf32>
    %19 = vector.extract %18[0, 0, 0] : f32 from vector<1x1x1xf32>
    %20 = vector.broadcast %19 : f32 to vector<1x1xf32>
    %c0_11 = arith.constant 0 : index
    %c3 = arith.constant 3 : index
    %c0_12 = arith.constant 0 : index
    %c0_13 = arith.constant 0 : index
    %21 = vector.load %arg1[%c0_11, %c3, %c0_12, %c0_13] : memref<1x4x2x128xf32, #tpu.memory_space<vmem>>, vector<1x1x2x128xf32>
    %22 = vector.shape_cast %21 : vector<1x1x2x128xf32> to vector<2x128xf32>
    %23 = vector.shape_cast %22 : vector<2x128xf32> to vector<1x2x128xf32>
    %cst_14 = arith.constant dense<0.000000e+00> : vector<1xf32>
    %24 = vector.multi_reduction <add>, %23, %cst_14 [1, 2] : vector<1x2x128xf32> to vector<1xf32>
    %25 = vector.shape_cast %24 : vector<1xf32> to vector<1x1x1xf32>
    %26 = vector.extract %25[0, 0, 0] : f32 from vector<1x1x1xf32>
    %27 = vector.broadcast %26 : f32 to vector<1x1xf32>
    %c0_15 = arith.constant 0 : index
    %c0_16 = arith.constant 0 : index
    %28 = vector.load %arg2[%c0_15, %c0_16] : memref<4x2xf32, #tpu.memory_space<vmem>>, vector<4x2xf32>
    %c0_17 = arith.constant 0 : index
    %c0_18 = arith.constant 0 : index
    %29 = vector.load %arg4[%c0_17, %c0_18] : memref<2x4xf32, #tpu.memory_space<vmem>>, vector<2x4xf32>
    %c0_19 = arith.constant 0 : index
    %c0_20 = arith.constant 0 : index
    %30 = vector.load %arg3[%c0_19, %c0_20] : memref<1x2xf32, #tpu.memory_space<vmem>>, vector<1x2xf32>
    %31 = vector.extract_strided_slice %28 {offsets = [0, 0], sizes = [1, 2], strides = [1, 1]} : vector<4x2xf32> to vector<1x2xf32>
    %32 = vector.broadcast %6 : vector<1x1xf32> to vector<1x2xf32>
    %33 = arith.mulf %32, %31 : vector<1x2xf32>
    %34 = arith.addf %30, %33 : vector<1x2xf32>
    %35 = vector.extract_strided_slice %28 {offsets = [1, 0], sizes = [1, 2], strides = [1, 1]} : vector<4x2xf32> to vector<1x2xf32>
    %36 = vector.broadcast %13 : vector<1x1xf32> to vector<1x2xf32>
    %37 = arith.mulf %36, %35 : vector<1x2xf32>
    %38 = arith.addf %34, %37 : vector<1x2xf32>
    %39 = vector.extract_strided_slice %28 {offsets = [2, 0], sizes = [1, 2], strides = [1, 1]} : vector<4x2xf32> to vector<1x2xf32>
    %40 = vector.broadcast %20 : vector<1x1xf32> to vector<1x2xf32>
    %41 = arith.mulf %40, %39 : vector<1x2xf32>
    %42 = arith.addf %38, %41 : vector<1x2xf32>
    %43 = vector.extract_strided_slice %28 {offsets = [3, 0], sizes = [1, 2], strides = [1, 1]} : vector<4x2xf32> to vector<1x2xf32>
    %44 = vector.broadcast %27 : vector<1x1xf32> to vector<1x2xf32>
    %45 = arith.mulf %44, %43 : vector<1x2xf32>
    %46 = arith.addf %42, %45 : vector<1x2xf32>
    %cst_21 = arith.constant 0.000000e+00 : f32
    %47 = vector.broadcast %cst_21 : f32 to vector<1x2xf32>
    %48 = arith.maximumf %46, %47 : vector<1x2xf32>
    %c0_22 = arith.constant 0 : index
    %c0_23 = arith.constant 0 : index
    %49 = vector.load %arg5[%c0_22, %c0_23] : memref<1x4xf32, #tpu.memory_space<vmem>>, vector<1x4xf32>
    %50 = vector.extract_strided_slice %48 {offsets = [0, 0], sizes = [1, 1], strides = [1, 1]} : vector<1x2xf32> to vector<1x1xf32>
    %51 = vector.extract_strided_slice %29 {offsets = [0, 0], sizes = [1, 4], strides = [1, 1]} : vector<2x4xf32> to vector<1x4xf32>
    %52 = vector.broadcast %50 : vector<1x1xf32> to vector<1x4xf32>
    %53 = arith.mulf %52, %51 : vector<1x4xf32>
    %54 = arith.addf %49, %53 : vector<1x4xf32>
    %55 = vector.extract_strided_slice %48 {offsets = [0, 1], sizes = [1, 1], strides = [1, 1]} : vector<1x2xf32> to vector<1x1xf32>
    %56 = vector.extract_strided_slice %29 {offsets = [1, 0], sizes = [1, 4], strides = [1, 1]} : vector<2x4xf32> to vector<1x4xf32>
    %57 = vector.broadcast %55 : vector<1x1xf32> to vector<1x4xf32>
    %58 = arith.mulf %57, %56 : vector<1x4xf32>
    %59 = arith.addf %54, %58 : vector<1x4xf32>
    %cst_24 = arith.constant 0.000000e+00 : f32
    %60 = vector.broadcast %cst_24 : f32 to vector<1x4xf32>
    %61 = arith.subf %60, %59 : vector<1x4xf32>
    %62 = math.exp %61 : vector<1x4xf32>
    %cst_25 = arith.constant 1.000000e+00 : f32
    %63 = vector.broadcast %cst_25 : f32 to vector<1x4xf32>
    %64 = arith.addf %63, %62 : vector<1x4xf32>
    %cst_26 = arith.constant 1.000000e+00 : f32
    %65 = vector.broadcast %cst_26 : f32 to vector<1x4xf32>
    %66 = arith.divf %65, %64 : vector<1x4xf32>
    %c0_27 = arith.constant 0 : index
    %c0_28 = arith.constant 0 : index
    %67 = vector.load %arg6[%c0_27, %c0_28] : memref<4x4xf32, #tpu.memory_space<vmem>>, vector<4x4xf32>
    %68 = vector.broadcast %66 : vector<1x4xf32> to vector<4x4xf32>
    %69 = arith.mulf %67, %68 : vector<4x4xf32>
    %c0_29 = arith.constant 0 : index
    %c0_30 = arith.constant 0 : index
    %70 = vector.load %arg7[%c0_29, %c0_30] : memref<4x1xf32, #tpu.memory_space<vmem>>, vector<4x1xf32>
    %71 = vector.extract_strided_slice %69 {offsets = [0, 0], sizes = [1, 1], strides = [1, 1]} : vector<4x4xf32> to vector<1x1xf32>
    %c0_31 = arith.constant 0 : index
    %c0_32 = arith.constant 0 : index
    %c0_33 = arith.constant 0 : index
    %c0_34 = arith.constant 0 : index
    %72 = vector.load %arg1[%c0_31, %c0_32, %c0_33, %c0_34] : memref<1x4x2x128xf32, #tpu.memory_space<vmem>>, vector<1x1x2x128xf32>
    %73 = vector.shape_cast %72 : vector<1x1x2x128xf32> to vector<2x128xf32>
    %74 = vector.broadcast %71 : vector<1x1xf32> to vector<2x128xf32>
    %75 = arith.mulf %74, %73 : vector<2x128xf32>
    %76 = vector.extract_strided_slice %70 {offsets = [0, 0], sizes = [1, 1], strides = [1, 1]} : vector<4x1xf32> to vector<1x1xf32>
    %77 = vector.broadcast %76 : vector<1x1xf32> to vector<2x128xf32>
    %78 = arith.addf %75, %77 : vector<2x128xf32>
    %79 = vector.extract_strided_slice %69 {offsets = [0, 1], sizes = [1, 1], strides = [1, 1]} : vector<4x4xf32> to vector<1x1xf32>
    %c0_35 = arith.constant 0 : index
    %c1_36 = arith.constant 1 : index
    %c0_37 = arith.constant 0 : index
    %c0_38 = arith.constant 0 : index
    %80 = vector.load %arg1[%c0_35, %c1_36, %c0_37, %c0_38] : memref<1x4x2x128xf32, #tpu.memory_space<vmem>>, vector<1x1x2x128xf32>
    %81 = vector.shape_cast %80 : vector<1x1x2x128xf32> to vector<2x128xf32>
    %82 = vector.broadcast %79 : vector<1x1xf32> to vector<2x128xf32>
    %83 = arith.mulf %82, %81 : vector<2x128xf32>
    %84 = arith.addf %78, %83 : vector<2x128xf32>
    %85 = vector.extract_strided_slice %69 {offsets = [0, 2], sizes = [1, 1], strides = [1, 1]} : vector<4x4xf32> to vector<1x1xf32>
    %c0_39 = arith.constant 0 : index
    %c2_40 = arith.constant 2 : index
    %c0_41 = arith.constant 0 : index
    %c0_42 = arith.constant 0 : index
    %86 = vector.load %arg1[%c0_39, %c2_40, %c0_41, %c0_42] : memref<1x4x2x128xf32, #tpu.memory_space<vmem>>, vector<1x1x2x128xf32>
    %87 = vector.shape_cast %86 : vector<1x1x2x128xf32> to vector<2x128xf32>
    %88 = vector.broadcast %85 : vector<1x1xf32> to vector<2x128xf32>
    %89 = arith.mulf %88, %87 : vector<2x128xf32>
    %90 = arith.addf %84, %89 : vector<2x128xf32>
    %91 = vector.extract_strided_slice %69 {offsets = [0, 3], sizes = [1, 1], strides = [1, 1]} : vector<4x4xf32> to vector<1x1xf32>
    %c0_43 = arith.constant 0 : index
    %c3_44 = arith.constant 3 : index
    %c0_45 = arith.constant 0 : index
    %c0_46 = arith.constant 0 : index
    %92 = vector.load %arg1[%c0_43, %c3_44, %c0_45, %c0_46] : memref<1x4x2x128xf32, #tpu.memory_space<vmem>>, vector<1x1x2x128xf32>
    %93 = vector.shape_cast %92 : vector<1x1x2x128xf32> to vector<2x128xf32>
    %94 = vector.broadcast %91 : vector<1x1xf32> to vector<2x128xf32>
    %95 = arith.mulf %94, %93 : vector<2x128xf32>
    %96 = arith.addf %90, %95 : vector<2x128xf32>
    %c0_47 = arith.constant 0 : index
    %c0_48 = arith.constant 0 : index
    %c0_49 = arith.constant 0 : index
    %c0_50 = arith.constant 0 : index
    %97 = vector.load %arg8[%c0_47, %c0_48, %c0_49, %c0_50] : memref<1x4x2x128xf32, #tpu.memory_space<vmem>>, vector<1x1x2x128xf32>
    %98 = vector.shape_cast %97 : vector<1x1x2x128xf32> to vector<2x128xf32>
    %99 = vector.shape_cast %96 : vector<2x128xf32> to vector<1x1x2x128xf32>
    tpu.vector_store %arg8[%c0_47, %c0_48, %c0_49, %c0_50], %99 {strides = array<i32>} : memref<1x4x2x128xf32, #tpu.memory_space<vmem>>, vector<1x1x2x128xf32>,
    %100 = vector.extract_strided_slice %69 {offsets = [1, 0], sizes = [1, 1], strides = [1, 1]} : vector<4x4xf32> to vector<1x1xf32>
    %c0_51 = arith.constant 0 : index
    %c0_52 = arith.constant 0 : index
    %c0_53 = arith.constant 0 : index
    %c0_54 = arith.constant 0 : index
    %101 = vector.load %arg1[%c0_51, %c0_52, %c0_53, %c0_54] : memref<1x4x2x128xf32, #tpu.memory_space<vmem>>, vector<1x1x2x128xf32>
    %102 = vector.shape_cast %101 : vector<1x1x2x128xf32> to vector<2x128xf32>
    %103 = vector.broadcast %100 : vector<1x1xf32> to vector<2x128xf32>
    %104 = arith.mulf %103, %102 : vector<2x128xf32>
    %105 = vector.extract_strided_slice %70 {offsets = [1, 0], sizes = [1, 1], strides = [1, 1]} : vector<4x1xf32> to vector<1x1xf32>
    %106 = vector.broadcast %105 : vector<1x1xf32> to vector<2x128xf32>
    %107 = arith.addf %104, %106 : vector<2x128xf32>
    %108 = vector.extract_strided_slice %69 {offsets = [1, 1], sizes = [1, 1], strides = [1, 1]} : vector<4x4xf32> to vector<1x1xf32>
    %c0_55 = arith.constant 0 : index
    %c1_56 = arith.constant 1 : index
    %c0_57 = arith.constant 0 : index
    %c0_58 = arith.constant 0 : index
    %109 = vector.load %arg1[%c0_55, %c1_56, %c0_57, %c0_58] : memref<1x4x2x128xf32, #tpu.memory_space<vmem>>, vector<1x1x2x128xf32>
    %110 = vector.shape_cast %109 : vector<1x1x2x128xf32> to vector<2x128xf32>
    %111 = vector.broadcast %108 : vector<1x1xf32> to vector<2x128xf32>
    %112 = arith.mulf %111, %110 : vector<2x128xf32>
    %113 = arith.addf %107, %112 : vector<2x128xf32>
    %114 = vector.extract_strided_slice %69 {offsets = [1, 2], sizes = [1, 1], strides = [1, 1]} : vector<4x4xf32> to vector<1x1xf32>
    %c0_59 = arith.constant 0 : index
    %c2_60 = arith.constant 2 : index
    %c0_61 = arith.constant 0 : index
    %c0_62 = arith.constant 0 : index
    %115 = vector.load %arg1[%c0_59, %c2_60, %c0_61, %c0_62] : memref<1x4x2x128xf32, #tpu.memory_space<vmem>>, vector<1x1x2x128xf32>
    %116 = vector.shape_cast %115 : vector<1x1x2x128xf32> to vector<2x128xf32>
    %117 = vector.broadcast %114 : vector<1x1xf32> to vector<2x128xf32>
    %118 = arith.mulf %117, %116 : vector<2x128xf32>
    %119 = arith.addf %113, %118 : vector<2x128xf32>
    %120 = vector.extract_strided_slice %69 {offsets = [1, 3], sizes = [1, 1], strides = [1, 1]} : vector<4x4xf32> to vector<1x1xf32>
    %c0_63 = arith.constant 0 : index
    %c3_64 = arith.constant 3 : index
    %c0_65 = arith.constant 0 : index
    %c0_66 = arith.constant 0 : index
    %121 = vector.load %arg1[%c0_63, %c3_64, %c0_65, %c0_66] : memref<1x4x2x128xf32, #tpu.memory_space<vmem>>, vector<1x1x2x128xf32>
    %122 = vector.shape_cast %121 : vector<1x1x2x128xf32> to vector<2x128xf32>
    %123 = vector.broadcast %120 : vector<1x1xf32> to vector<2x128xf32>
    %124 = arith.mulf %123, %122 : vector<2x128xf32>
    %125 = arith.addf %119, %124 : vector<2x128xf32>
    %c0_67 = arith.constant 0 : index
    %c1_68 = arith.constant 1 : index
    %c0_69 = arith.constant 0 : index
    %c0_70 = arith.constant 0 : index
    %126 = vector.load %arg8[%c0_67, %c1_68, %c0_69, %c0_70] : memref<1x4x2x128xf32, #tpu.memory_space<vmem>>, vector<1x1x2x128xf32>
    %127 = vector.shape_cast %126 : vector<1x1x2x128xf32> to vector<2x128xf32>
    %128 = vector.shape_cast %125 : vector<2x128xf32> to vector<1x1x2x128xf32>
    tpu.vector_store %arg8[%c0_67, %c1_68, %c0_69, %c0_70], %128 {strides = array<i32>} : memref<1x4x2x128xf32, #tpu.memory_space<vmem>>, vector<1x1x2x128xf32>,
    %129 = vector.extract_strided_slice %69 {offsets = [2, 0], sizes = [1, 1], strides = [1, 1]} : vector<4x4xf32> to vector<1x1xf32>
    %c0_71 = arith.constant 0 : index
    %c0_72 = arith.constant 0 : index
    %c0_73 = arith.constant 0 : index
    %c0_74 = arith.constant 0 : index
    %130 = vector.load %arg1[%c0_71, %c0_72, %c0_73, %c0_74] : memref<1x4x2x128xf32, #tpu.memory_space<vmem>>, vector<1x1x2x128xf32>
    %131 = vector.shape_cast %130 : vector<1x1x2x128xf32> to vector<2x128xf32>
    %132 = vector.broadcast %129 : vector<1x1xf32> to vector<2x128xf32>
    %133 = arith.mulf %132, %131 : vector<2x128xf32>
    %134 = vector.extract_strided_slice %70 {offsets = [2, 0], sizes = [1, 1], strides = [1, 1]} : vector<4x1xf32> to vector<1x1xf32>
    %135 = vector.broadcast %134 : vector<1x1xf32> to vector<2x128xf32>
    %136 = arith.addf %133, %135 : vector<2x128xf32>
    %137 = vector.extract_strided_slice %69 {offsets = [2, 1], sizes = [1, 1], strides = [1, 1]} : vector<4x4xf32> to vector<1x1xf32>
    %c0_75 = arith.constant 0 : index
    %c1_76 = arith.constant 1 : index
    %c0_77 = arith.constant 0 : index
    %c0_78 = arith.constant 0 : index
    %138 = vector.load %arg1[%c0_75, %c1_76, %c0_77, %c0_78] : memref<1x4x2x128xf32, #tpu.memory_space<vmem>>, vector<1x1x2x128xf32>
    %139 = vector.shape_cast %138 : vector<1x1x2x128xf32> to vector<2x128xf32>
    %140 = vector.broadcast %137 : vector<1x1xf32> to vector<2x128xf32>
    %141 = arith.mulf %140, %139 : vector<2x128xf32>
    %142 = arith.addf %136, %141 : vector<2x128xf32>
    %143 = vector.extract_strided_slice %69 {offsets = [2, 2], sizes = [1, 1], strides = [1, 1]} : vector<4x4xf32> to vector<1x1xf32>
    %c0_79 = arith.constant 0 : index
    %c2_80 = arith.constant 2 : index
    %c0_81 = arith.constant 0 : index
    %c0_82 = arith.constant 0 : index
    %144 = vector.load %arg1[%c0_79, %c2_80, %c0_81, %c0_82] : memref<1x4x2x128xf32, #tpu.memory_space<vmem>>, vector<1x1x2x128xf32>
    %145 = vector.shape_cast %144 : vector<1x1x2x128xf32> to vector<2x128xf32>
    %146 = vector.broadcast %143 : vector<1x1xf32> to vector<2x128xf32>
    %147 = arith.mulf %146, %145 : vector<2x128xf32>
    %148 = arith.addf %142, %147 : vector<2x128xf32>
    %149 = vector.extract_strided_slice %69 {offsets = [2, 3], sizes = [1, 1], strides = [1, 1]} : vector<4x4xf32> to vector<1x1xf32>
    %c0_83 = arith.constant 0 : index
    %c3_84 = arith.constant 3 : index
    %c0_85 = arith.constant 0 : index
    %c0_86 = arith.constant 0 : index
    %150 = vector.load %arg1[%c0_83, %c3_84, %c0_85, %c0_86] : memref<1x4x2x128xf32, #tpu.memory_space<vmem>>, vector<1x1x2x128xf32>
    %151 = vector.shape_cast %150 : vector<1x1x2x128xf32> to vector<2x128xf32>
    %152 = vector.broadcast %149 : vector<1x1xf32> to vector<2x128xf32>
    %153 = arith.mulf %152, %151 : vector<2x128xf32>
    %154 = arith.addf %148, %153 : vector<2x128xf32>
    %c0_87 = arith.constant 0 : index
    %c2_88 = arith.constant 2 : index
    %c0_89 = arith.constant 0 : index
    %c0_90 = arith.constant 0 : index
    %155 = vector.load %arg8[%c0_87, %c2_88, %c0_89, %c0_90] : memref<1x4x2x128xf32, #tpu.memory_space<vmem>>, vector<1x1x2x128xf32>
    %156 = vector.shape_cast %155 : vector<1x1x2x128xf32> to vector<2x128xf32>
    %157 = vector.shape_cast %154 : vector<2x128xf32> to vector<1x1x2x128xf32>
    tpu.vector_store %arg8[%c0_87, %c2_88, %c0_89, %c0_90], %157 {strides = array<i32>} : memref<1x4x2x128xf32, #tpu.memory_space<vmem>>, vector<1x1x2x128xf32>,
    %158 = vector.extract_strided_slice %69 {offsets = [3, 0], sizes = [1, 1], strides = [1, 1]} : vector<4x4xf32> to vector<1x1xf32>
    %c0_91 = arith.constant 0 : index
    %c0_92 = arith.constant 0 : index
    %c0_93 = arith.constant 0 : index
    %c0_94 = arith.constant 0 : index
    %159 = vector.load %arg1[%c0_91, %c0_92, %c0_93, %c0_94] : memref<1x4x2x128xf32, #tpu.memory_space<vmem>>, vector<1x1x2x128xf32>
    %160 = vector.shape_cast %159 : vector<1x1x2x128xf32> to vector<2x128xf32>
    %161 = vector.broadcast %158 : vector<1x1xf32> to vector<2x128xf32>
    %162 = arith.mulf %161, %160 : vector<2x128xf32>
    %163 = vector.extract_strided_slice %70 {offsets = [3, 0], sizes = [1, 1], strides = [1, 1]} : vector<4x1xf32> to vector<1x1xf32>
    %164 = vector.broadcast %163 : vector<1x1xf32> to vector<2x128xf32>
    %165 = arith.addf %162, %164 : vector<2x128xf32>
    %166 = vector.extract_strided_slice %69 {offsets = [3, 1], sizes = [1, 1], strides = [1, 1]} : vector<4x4xf32> to vector<1x1xf32>
    %c0_95 = arith.constant 0 : index
    %c1_96 = arith.constant 1 : index
    %c0_97 = arith.constant 0 : index
    %c0_98 = arith.constant 0 : index
    %167 = vector.load %arg1[%c0_95, %c1_96, %c0_97, %c0_98] : memref<1x4x2x128xf32, #tpu.memory_space<vmem>>, vector<1x1x2x128xf32>
    %168 = vector.shape_cast %167 : vector<1x1x2x128xf32> to vector<2x128xf32>
    %169 = vector.broadcast %166 : vector<1x1xf32> to vector<2x128xf32>
    %170 = arith.mulf %169, %168 : vector<2x128xf32>
    %171 = arith.addf %165, %170 : vector<2x128xf32>
    %172 = vector.extract_strided_slice %69 {offsets = [3, 2], sizes = [1, 1], strides = [1, 1]} : vector<4x4xf32> to vector<1x1xf32>
    %c0_99 = arith.constant 0 : index
    %c2_100 = arith.constant 2 : index
    %c0_101 = arith.constant 0 : index
    %c0_102 = arith.constant 0 : index
    %173 = vector.load %arg1[%c0_99, %c2_100, %c0_101, %c0_102] : memref<1x4x2x128xf32, #tpu.memory_space<vmem>>, vector<1x1x2x128xf32>
    %174 = vector.shape_cast %173 : vector<1x1x2x128xf32> to vector<2x128xf32>
    %175 = vector.broadcast %172 : vector<1x1xf32> to vector<2x128xf32>
    %176 = arith.mulf %175, %174 : vector<2x128xf32>
    %177 = arith.addf %171, %176 : vector<2x128xf32>
    %178 = vector.extract_strided_slice %69 {offsets = [3, 3], sizes = [1, 1], strides = [1, 1]} : vector<4x4xf32> to vector<1x1xf32>
    %c0_103 = arith.constant 0 : index
    %c3_104 = arith.constant 3 : index
    %c0_105 = arith.constant 0 : index
    %c0_106 = arith.constant 0 : index
    %179 = vector.load %arg1[%c0_103, %c3_104, %c0_105, %c0_106] : memref<1x4x2x128xf32, #tpu.memory_space<vmem>>, vector<1x1x2x128xf32>
    %180 = vector.shape_cast %179 : vector<1x1x2x128xf32> to vector<2x128xf32>
    %181 = vector.broadcast %178 : vector<1x1xf32> to vector<2x128xf32>
    %182 = arith.mulf %181, %180 : vector<2x128xf32>
    %183 = arith.addf %177, %182 : vector<2x128xf32>
    %c0_107 = arith.constant 0 : index
    %c3_108 = arith.constant 3 : index
    %c0_109 = arith.constant 0 : index
    %c0_110 = arith.constant 0 : index
    %184 = vector.load %arg8[%c0_107, %c3_108, %c0_109, %c0_110] : memref<1x4x2x128xf32, #tpu.memory_space<vmem>>, vector<1x1x2x128xf32>
    %185 = vector.shape_cast %184 : vector<1x1x2x128xf32> to vector<2x128xf32>
    %186 = vector.shape_cast %183 : vector<2x128xf32> to vector<1x1x2x128xf32>
    tpu.vector_store %arg8[%c0_107, %c3_108, %c0_109, %c0_110], %186 {strides = array<i32>} : memref<1x4x2x128xf32, #tpu.memory_space<vmem>>, vector<1x1x2x128xf32>,
    return
  }
  func.func @transform_0(%arg0: i32) -> (i32, i32, i32, i32) {
    %c0_i32 = arith.constant 0 : i32
    %c0_i32_0 = arith.constant 0 : i32
    %c0_i32_1 = arith.constant 0 : i32
    %c0_i32_2 = arith.constant 0 : i32
    return %arg0, %c0_i32, %c0_i32_0, %c0_i32_1 : i32, i32, i32, i32
  }
  func.func @transform_1(%arg0: i32) -> (i32, i32) {
    %c0_i32 = arith.constant 0 : i32
    %c0_i32_0 = arith.constant 0 : i32
    %c0_i32_1 = arith.constant 0 : i32
    return %c0_i32, %c0_i32_0 : i32, i32
  }
  func.func @transform_2(%arg0: i32) -> (i32, i32) {
    %c0_i32 = arith.constant 0 : i32
    %c0_i32_0 = arith.constant 0 : i32
    %c0_i32_1 = arith.constant 0 : i32
    return %c0_i32, %c0_i32_0 : i32, i32
  }
  func.func @transform_3(%arg0: i32) -> (i32, i32) {
    %c0_i32 = arith.constant 0 : i32
    %c0_i32_0 = arith.constant 0 : i32
    %c0_i32_1 = arith.constant 0 : i32
    return %c0_i32, %c0_i32_0 : i32, i32
  }
  func.func @transform_4(%arg0: i32) -> (i32, i32) {
    %c0_i32 = arith.constant 0 : i32
    %c0_i32_0 = arith.constant 0 : i32
    %c0_i32_1 = arith.constant 0 : i32
    return %c0_i32, %c0_i32_0 : i32, i32
  }
  func.func @transform_5(%arg0: i32) -> (i32, i32) {
    %c0_i32 = arith.constant 0 : i32
    %c0_i32_0 = arith.constant 0 : i32
    %c0_i32_1 = arith.constant 0 : i32
    return %c0_i32, %c0_i32_0 : i32, i32
  }
  func.func @transform_6(%arg0: i32) -> (i32, i32) {
    %c0_i32 = arith.constant 0 : i32
    %c0_i32_0 = arith.constant 0 : i32
    %c0_i32_1 = arith.constant 0 : i32
    return %c0_i32, %c0_i32_0 : i32, i32
  }
  func.func @transform_7(%arg0: i32) -> (i32, i32, i32, i32) {
    %c0_i32 = arith.constant 0 : i32
    %c0_i32_0 = arith.constant 0 : i32
    %c0_i32_1 = arith.constant 0 : i32
    %c0_i32_2 = arith.constant 0 : i32
    return %arg0, %c0_i32, %c0_i32_0, %c0_i32_1 : i32, i32, i32, i32
  }
}

</mosaic_0001>

<llo_original>
// kernel: cse_block.1
$region0: #{cse_block.1}
  #allocation0 [shape = 'u32[]', space=smem, size = 0x4, offset = 0x4, fixed_abs, tag = 'smem constant byte address 0x4 - core index']
  #allocation1 [shape = 'u32[72,128]{1,0:T(1,128)}', space=vmem, size = 0x9000, scoped, tag = 'internal scratch']
  %s0 = inlined_call_operand.vmem [shape: f32[2,4,2,128], index: 0, kind: input, shape index: {}]
  %s1 = inlined_call_operand.vmem [shape: f32[4,2], index: 1, kind: input, shape index: {}]
  %s2 = inlined_call_operand.vmem [shape: f32[1,2], index: 2, kind: input, shape index: {}]
  %s3 = inlined_call_operand.vmem [shape: f32[2,4], index: 3, kind: input, shape index: {}]
  %s4 = inlined_call_operand.vmem [shape: f32[1,4], index: 4, kind: input, shape index: {}]
  %s5 = inlined_call_operand.vmem [shape: f32[4,4], index: 5, kind: input, shape index: {}]
  %s6 = inlined_call_operand.vmem [shape: f32[4,1], index: 6, kind: input, shape index: {}]
  %s7 = inlined_call_operand.vmem [shape: f32[2,4,2,128], index: 7, kind: output, shape index: {}]
  %s8 = sld [smem:[#allocation0]]
  $region61: #{cse_block.1} parent=0
    _
  %s10 = ssub.s32 1, %s8
  %s11 = scalar_select 0, %s10, %s8
  loop: start=0, step=1, limit=4
  $region2: #{cse_block.1} parent=0 // loop_pre_header
    _
  $region3: #{cse_block.1} parent=0 // loop_header
    %s13 = sphi 0, %s17
    %p14 = scmp.ge.s32.totalorder %s13, 4
    %s23 = sphi 0, %s25
    %s26 = sphi 0, %s23
    %s27 = sphi 0, %s26
    %s43 = sphi 0, %s27
    %s47 = sphi 0, %s47
    %s49 = sphi 0, %s47
    %s50 = sphi 0, %s49
    %s64 = sphi 0, %s50
    %s68 = sphi 0, %s68
    %s70 = sphi 0, %s68
    %s71 = sphi 0, %s70
    %s85 = sphi 0, %s71
    %s89 = sphi 0, %s89
    %s91 = sphi 0, %s89
    %s92 = sphi 0, %s91
    %s106 = sphi 0, %s92
    %s110 = sphi 0, %s110
    %s112 = sphi 0, %s110
    %s113 = sphi 0, %s112
    %s127 = sphi 0, %s113
    %s131 = sphi 0, %s131
    %s133 = sphi 0, %s131
    %s134 = sphi 0, %s133
    %s148 = sphi 0, %s134
    %s152 = sphi 0, %s152
    %s154 = sphi 0, %s152
    %s155 = sphi 0, %s154
    %s169 = sphi 0, %s155
    %s175 = sphi 0, %s177
    %s178 = sphi 0, %s175
    %s179 = sphi 0, %s178
    %s195 = sphi 0, %s179
  $region4: #{cse_block.1} parent=0 // loop_header_branch
    %16 = sbr.rel (%p14) target = $region8
  $region5: #{cse_block.1} parent=0 // loop_body
    %s18 = ssub.s32 %s13, 1
    %s19 = ssub.s32 %s13, 2
    %s20 = sadd.s32 %s13, 1
    %s21 = ssub.s32 %s13, %s20
    %p22 = scmp.eq.s32.totalorder %s21, 0
    %s24 = sadd.s32 %s23, 1
    %s25 = scalar_select %p22, %s23, %s24
    %p28 = pneg %p22
    %p29 = scmp.eq.s32.totalorder %s13, 1
    %p30 = por %p28, %p29
    %p31 = scmp.ne.s32.totalorder %s23, %s26
    %p32 = scmp.eq.s32.totalorder %s13, 0
    %p33 = por %p31, %p32
    %p34 = scmp.ne.s32.totalorder %s23, %s26
    %p35 = scmp.eq.s32.totalorder %s18, 1
    %p36 = por %p34, %p35
    %p37 = scmp.ne.s32.totalorder %s26, %s27
    %p38 = scmp.eq.s32.totalorder %s18, 0
    %p39 = por %p37, %p38
    %p40 = scmp.ne.s32.totalorder %s26, %s27
    %p41 = scmp.eq.s32.totalorder %s19, 1
    %p42 = por %p40, %p41
    %p44 = scmp.ne.s32.totalorder %s27, %s43
    %p45 = scmp.eq.s32.totalorder %s19, 0
    %p46 = por %p44, %p45
    %s48 = sadd.s32 %s47, 1
    %p51 = scmp.eq.s32.totalorder %s13, 1
    %p52 = scmp.ne.s32.totalorder %s47, %s49
    %p53 = scmp.eq.s32.totalorder %s13, 0
    %p54 = por %p52, %p53
    %p55 = scmp.ne.s32.totalorder %s47, %s49
    %p56 = scmp.eq.s32.totalorder %s18, 1
    %p57 = por %p55, %p56
    %p58 = scmp.ne.s32.totalorder %s49, %s50
    %p59 = scmp.eq.s32.totalorder %s18, 0
    %p60 = por %p58, %p59
    %p61 = scmp.ne.s32.totalorder %s49, %s50
    %p62 = scmp.eq.s32.totalorder %s19, 1
    %p63 = por %p61, %p62
    %p65 = scmp.ne.s32.totalorder %s50, %s64
    %p66 = scmp.eq.s32.totalorder %s19, 0
    %p67 = por %p65, %p66
    %s69 = sadd.s32 %s68, 1
    %p72 = scmp.eq.s32.totalorder %s13, 1
    %p73 = scmp.ne.s32.totalorder %s68, %s70
    %p74 = scmp.eq.s32.totalorder %s13, 0
    %p75 = por %p73, %p74
    %p76 = scmp.ne.s32.totalorder %s68, %s70
    %p77 = scmp.eq.s32.totalorder %s18, 1
    %p78 = por %p76, %p77
    %p79 = scmp.ne.s32.totalorder %s70, %s71
    %p80 = scmp.eq.s32.totalorder %s18, 0
    %p81 = por %p79, %p80
    %p82 = scmp.ne.s32.totalorder %s70, %s71
    %p83 = scmp.eq.s32.totalorder %s19, 1
    %p84 = por %p82, %p83
    %p86 = scmp.ne.s32.totalorder %s71, %s85
    %p87 = scmp.eq.s32.totalorder %s19, 0
    %p88 = por %p86, %p87
    %s90 = sadd.s32 %s89, 1
    %p93 = scmp.eq.s32.totalorder %s13, 1
    %p94 = scmp.ne.s32.totalorder %s89, %s91
    %p95 = scmp.eq.s32.totalorder %s13, 0
    %p96 = por %p94, %p95
    %p97 = scmp.ne.s32.totalorder %s89, %s91
    %p98 = scmp.eq.s32.totalorder %s18, 1
    %p99 = por %p97, %p98
    %p100 = scmp.ne.s32.totalorder %s91, %s92
    %p101 = scmp.eq.s32.totalorder %s18, 0
    %p102 = por %p100, %p101
    %p103 = scmp.ne.s32.totalorder %s91, %s92
    %p104 = scmp.eq.s32.totalorder %s19, 1
    %p105 = por %p103, %p104
    %p107 = scmp.ne.s32.totalorder %s92, %s106
    %p108 = scmp.eq.s32.totalorder %s19, 0
    %p109 = por %p107, %p108
    %s111 = sadd.s32 %s110, 1
    %p114 = scmp.eq.s32.totalorder %s13, 1
    %p115 = scmp.ne.s32.totalorder %s110, %s112
    %p116 = scmp.eq.s32.totalorder %s13, 0
    %p117 = por %p115, %p116
    %p118 = scmp.ne.s32.totalorder %s110, %s112
    %p119 = scmp.eq.s32.totalorder %s18, 1
    %p120 = por %p118, %p119
    %p121 = scmp.ne.s32.totalorder %s112, %s113
    %p122 = scmp.eq.s32.totalorder %s18, 0
    %p123 = por %p121, %p122
    %p124 = scmp.ne.s32.totalorder %s112, %s113
    %p125 = scmp.eq.s32.totalorder %s19, 1
    %p126 = por %p124, %p125
    %p128 = scmp.ne.s32.totalorder %s113, %s127
    %p129 = scmp.eq.s32.totalorder %s19, 0
    %p130 = por %p128, %p129
    %s132 = sadd.s32 %s131, 1
    %p135 = scmp.eq.s32.totalorder %s13, 1
    %p136 = scmp.ne.s32.totalorder %s131, %s133
    %p137 = scmp.eq.s32.totalorder %s13, 0
    %p138 = por %p136, %p137
    %p139 = scmp.ne.s32.totalorder %s131, %s133
    %p140 = scmp.eq.s32.totalorder %s18, 1
    %p141 = por %p139, %p140
    %p142 = scmp.ne.s32.totalorder %s133, %s134
    %p143 = scmp.eq.s32.totalorder %s18, 0
    %p144 = por %p142, %p143
    %p145 = scmp.ne.s32.totalorder %s133, %s134
    %p146 = scmp.eq.s32.totalorder %s19, 1
    %p147 = por %p145, %p146
    %p149 = scmp.ne.s32.totalorder %s134, %s148
    %p150 = scmp.eq.s32.totalorder %s19, 0
    %p151 = por %p149, %p150
    %s153 = sadd.s32 %s152, 1
    %p156 = scmp.eq.s32.totalorder %s13, 1
    %p157 = scmp.ne.s32.totalorder %s152, %s154
    %p158 = scmp.eq.s32.totalorder %s13, 0
    %p159 = por %p157, %p158
    %p160 = scmp.ne.s32.totalorder %s152, %s154
    %p161 = scmp.eq.s32.totalorder %s18, 1
    %p162 = por %p160, %p161
    %p163 = scmp.ne.s32.totalorder %s154, %s155
    %p164 = scmp.eq.s32.totalorder %s18, 0
    %p165 = por %p163, %p164
    %p166 = scmp.ne.s32.totalorder %s154, %s155
    %p167 = scmp.eq.s32.totalorder %s19, 1
    %p168 = por %p166, %p167
    %p170 = scmp.ne.s32.totalorder %s155, %s169
    %p171 = scmp.eq.s32.totalorder %s19, 0
    %p172 = por %p170, %p171
    %s173 = ssub.s32 %s13, %s20
    %p174 = scmp.eq.s32.totalorder %s173, 0
    %s176 = sadd.s32 %s175, 1
    %s177 = scalar_select %p174, %s175, %s176
    %p180 = pneg %p174
    %p181 = scmp.eq.s32.totalorder %s13, 1
    %p182 = por %p180, %p181
    %p183 = scmp.ne.s32.totalorder %s175, %s178
    %p184 = scmp.eq.s32.totalorder %s13, 0
    %p185 = por %p183, %p184
    %p186 = scmp.ne.s32.totalorder %s175, %s178
    %p187 = scmp.eq.s32.totalorder %s18, 1
    %p188 = por %p186, %p187
    %p189 = scmp.ne.s32.totalorder %s178, %s179
    %p190 = scmp.eq.s32.totalorder %s18, 0
    %p191 = por %p189, %p190
    %p192 = scmp.ne.s32.totalorder %s178, %s179
    %p193 = scmp.eq.s32.totalorder %s19, 1
    %p194 = por %p192, %p193
    %p196 = scmp.ne.s32.totalorder %s179, %s195
    %p197 = scmp.eq.s32.totalorder %s19, 0
    %p198 = por %p196, %p197
    %p199 = scmp.le.s32.totalorder 1, %s13
    %p200 = scmp.lt.s32.totalorder %s13, 3
    %p201 = pnand %p199, %p200
    %p202 = pneg %p201
    // Predicated region
    $region9: #{cse_block.1} parent=5 // pred_check
      _
    $region10: #{cse_block.1} parent=5 // pred_check_branch
      %204 = sbr.rel (%p201) target = $region12
    $region11: #{cse_block.1} parent=5 // pred_region
      %s205 = ssub.s32 %s13, 1
      // Predicated region
      $region13: #{cse_block.1} parent=11 // pred_check
        %p206 = pneg %p60
      $region14: #{cse_block.1} parent=11 // pred_check_branch
        %208 = sbr.rel (%p206) target = $region16
      $region15: #{cse_block.1} parent=11 // pred_region
        _
      $region16: #{cse_block.1} parent=11 // pred_fallthru
        _
      // Predicated region
      $region17: #{cse_block.1} parent=11 // pred_check
        %p209 = pneg %p81
      $region18: #{cse_block.1} parent=11 // pred_check_branch
        %211 = sbr.rel (%p209) target = $region20
      $region19: #{cse_block.1} parent=11 // pred_region
        _
      $region20: #{cse_block.1} parent=11 // pred_fallthru
        _
      // Predicated region
      $region21: #{cse_block.1} parent=11 // pred_check
        %p212 = pneg %p102
      $region22: #{cse_block.1} parent=11 // pred_check_branch
        %214 = sbr.rel (%p212) target = $region24
      $region23: #{cse_block.1} parent=11 // pred_region
        _
      $region24: #{cse_block.1} parent=11 // pred_fallthru
        _
      // Predicated region
      $region25: #{cse_block.1} parent=11 // pred_check
        %p215 = pneg %p123
      $region26: #{cse_block.1} parent=11 // pred_check_branch
        %217 = sbr.rel (%p215) target = $region28
      $region27: #{cse_block.1} parent=11 // pred_region
        _
      $region28: #{cse_block.1} parent=11 // pred_fallthru
        _
      // Predicated region
      $region29: #{cse_block.1} parent=11 // pred_check
        %p218 = pneg %p144
      $region30: #{cse_block.1} parent=11 // pred_check_branch
        %220 = sbr.rel (%p218) target = $region32
      $region31: #{cse_block.1} parent=11 // pred_region
        _
      $region32: #{cse_block.1} parent=11 // pred_fallthru
        _
      // Predicated region
      $region33: #{cse_block.1} parent=11 // pred_check
        %p221 = pneg %p165
      $region34: #{cse_block.1} parent=11 // pred_check_branch
        %223 = sbr.rel (%p221) target = $region36
      $region35: #{cse_block.1} parent=11 // pred_region
        _
      $region36: #{cse_block.1} parent=11 // pred_fallthru
        _
    $region12: #{cse_block.1} parent=5 // pred_fallthru
      _
    %p224 = scmp.lt.s32.totalorder %s13, 2
    // Predicated region
    $region37: #{cse_block.1} parent=5 // pred_check
      %p225 = pneg %p224
    $region38: #{cse_block.1} parent=5 // pred_check_branch
      %227 = sbr.rel (%p225) target = $region40
    $region39: #{cse_block.1} parent=5 // pred_region
      // Predicated region
      $region41: #{cse_block.1} parent=39 // pred_check
        %p228 = pneg %p33
      $region42: #{cse_block.1} parent=39 // pred_check_branch
        %230 = sbr.rel (%p228) target = $region44
      $region43: #{cse_block.1} parent=39 // pred_region
        %p231 = scmp.lt.s32.totalorder %s13, 1
        %s232 = scalar_select %p231, %s13, 1
        %s233 = smul.addr %s232, 4
        %s234 = smul.addr %s233, 2
        %s235 = scalar_lea.vmem %s0, %s234
      $region44: #{cse_block.1} parent=39 // pred_fallthru
        _
    $region40: #{cse_block.1} parent=5 // pred_fallthru
      _
    %p236 = scmp.le.s32.totalorder 1, %s13
    %p237 = scmp.lt.s32.totalorder %s13, 3
    %p238 = pnand %p236, %p237
    %p239 = pneg %p238
    // Predicated region
    $region45: #{cse_block.1} parent=5 // pred_check
      _
    $region46: #{cse_block.1} parent=5 // pred_check_branch
      %241 = sbr.rel (%p238) target = $region48
    $region47: #{cse_block.1} parent=5 // pred_region
      %s242 = ssub.s32 %s13, 1
      %p243 = scmp.lt.s32.totalorder %s18, 1
      %s244 = scalar_select %p243, %s18, 1
      %s245 = smul.addr %s244, 4
      %s246 = smul.addr %s245, 2
      %s247 = scalar_lea.vmem %s0, %s246
      %p248 = pneg %p39
      %p249 = pneg %p36
      %p250 = pneg %p60
      %p251 = pneg %p57
      %p252 = pneg %p81
      %p253 = pneg %p78
      %p254 = pneg %p102
      %p255 = pneg %p99
      %p256 = pneg %p123
      %p257 = pneg %p120
      %p258 = pneg %p144
      %p259 = pneg %p141
      %p260 = pneg %p165
      %p261 = pneg %p162
      %p262 = pneg %p191
      %p263 = pneg %p188
      %p264 = scmp.lt.s32.totalorder %s18, 1
      %s265 = scalar_select %p264, %s18, 1
      %s266 = smul.addr %s265, 4
      %s267 = smul.addr %s266, 2
      %s268 = scalar_lea.vmem %s7, %s267
      %p269 = scmp.lt.s32.totalorder %s18, 1
      %s270 = scalar_select %p269, %s18, 1
      %s271 = smul.addr %s270, 4
      %s272 = smul.addr %s271, 2
      %s273 = scalar_lea.vmem %s0, %s272
      %p274 = scmp.lt.s32.totalorder %s18, 1
      %s275 = scalar_select %p274, %s18, 1
      %s276 = smul.addr %s275, 4
      %s277 = smul.addr %s276, 2
      %s278 = scalar_lea.vmem %s7, %s277
      %v279 = vld [vmem:[%s273] sm:$0x3]
      %vm280 = vcmask 1041408
      %v281 = vsel %vm280, %v279, 0.0
      %282 = vadd.xlane.f32.xlu0 %v281
      %v283 = vpop.xlane.xlu0 %282
      %v284 = vrot.slane %v283, 4
      %v285 = vadd.f32 %v283, %v284
      %v286 = vrot.slane %v285, 2
      %v287 = vadd.f32 %v285, %v286
      %v288 = vrot.slane %v287, 1
      %v289 = vadd.f32 %v287, %v288
      %s290 = vtos %v289
      %s291 = scalar_lea.vmem %s273, 2
      %v292 = vld [vmem:[%s291] sm:$0x3]
      %v293 = vsel %vm280, %v292, 0.0
      %294 = vadd.xlane.f32.xlu0 %v293
      %v295 = vpop.xlane.xlu0 %294
      %v296 = vrot.slane %v295, 4
      %v297 = vadd.f32 %v295, %v296
      %v298 = vrot.slane %v297, 2
      %v299 = vadd.f32 %v297, %v298
      %v300 = vrot.slane %v299, 1
      %v301 = vadd.f32 %v299, %v300
      %s302 = vtos %v301
      %s303 = scalar_lea.vmem %s273, 4
      %v304 = vld [vmem:[%s303] sm:$0x3]
      %v305 = vsel %vm280, %v304, 0.0
      %306 = vadd.xlane.f32.xlu0 %v305
      %v307 = vpop.xlane.xlu0 %306
      %v308 = vrot.slane %v307, 4
      %v309 = vadd.f32 %v307, %v308
      %v310 = vrot.slane %v309, 2
      %v311 = vadd.f32 %v309, %v310
      %v312 = vrot.slane %v311, 1
      %v313 = vadd.f32 %v311, %v312
      %s314 = vtos %v313
      %s315 = scalar_lea.vmem %s273, 6
      %v316 = vld [vmem:[%s315] sm:$0x3]
      %v317 = vsel %vm280, %v316, 0.0
      %318 = vadd.xlane.f32.xlu0 %v317
      %v319 = vpop.xlane.xlu0 %318
      %v320 = vrot.slane %v319, 4
      %v321 = vadd.f32 %v319, %v320
      %v322 = vrot.slane %v321, 2
      %v323 = vadd.f32 %v321, %v322
      %v324 = vrot.slane %v323, 1
      %v325 = vadd.f32 %v323, %v324
      %s326 = vtos %v325
      %v327 = vld [vmem:[%s1] sm:$0xf]
      %v328 = vld [vmem:[%s3] sm:$0x3]
      %v329 = vld [vmem:[%s2] sm:$0x1]
      %v330 = vstv %s290
      %v331 = vmul.f32 %v330, %v327
      %v332 = vadd.f32 %v329, %v331
      %v333 = vstv %s302
      %v334 = vmul.f32 %v333, %v327
      %336 = vst [vmem:[#allocation1] sm:$0xff] %v334
      %s337 = scalar_lea.vmem [#allocation1], 1
      %v338 = vld [vmem:[%s337] ss:$9 sm:$0xff]
      %v340 = vadd.f32 %v332, %v338
      %v341 = vstv %s314
      %v342 = vmul.f32 %v341, %v327
      %344 = vst [vmem:[#allocation1] sm:$0xff] %v342
      %s345 = scalar_lea.vmem [#allocation1], 2
      %v346 = vld [vmem:[%s345] ss:$9 sm:$0xff]
      %v348 = vadd.f32 %v340, %v346
      %v349 = vstv %s326
      %v350 = vmul.f32 %v349, %v327
      %352 = vst [vmem:[#allocation1] sm:$0xff] %v350
      %s353 = scalar_lea.vmem [#allocation1], 3
      %v354 = vld [vmem:[%s353] ss:$9 sm:$0xff]
      %v356 = vadd.f32 %v348, %v354
      %v357 = vmax.f32 %v356, 0.0
      %v358 = vld [vmem:[%s4] sm:$0x1]
      %360 = vset.pattern.permute.xlu0 0
      %361 = vperm.xlu0 %360, %v357
      %v362 = vpop.permute.xlu0 %361
      %v364 = vperm.slane %v362, 0
      %v365 = vmul.f32 %v364, %v328
      %v366 = vadd.f32 %v358, %v365
      %367 = vset.pattern.permute.xlu0 1
      %368 = vperm.xlu0 %367, %v357
      %v369 = vpop.permute.xlu0 %368
      %v371 = vperm.slane %v369, 0
      %v372 = vmul.f32 %v371, %v328
      %374 = vst [vmem:[#allocation1] sm:$0xff] %v372
      %s375 = scalar_lea.vmem [#allocation1], 1
      %v376 = vld [vmem:[%s375] ss:$9 sm:$0xff]
      %v378 = vadd.f32 %v366, %v376
      %v379 = vsub.f32 0.0, %v378
      %v380 = vmul.f32 %v379, 1.442695
      %v381 = vpow.pop %v380
      %v382 = vadd.f32 %v381, 1.0
      %v383 = vrcp.pop %v382
      %v384 = vmul.f32 %v382, %v383
      %v385 = vsub.f32 1.0, %v384
      %v386 = vmul.f32 %v383, %v385
      %v387 = vadd.f32 %v383, %v386
      %vm388 = vweird.f32 %v382
      %vm389 = vweird.f32 %v383
      %vm390 = vmor %vm388, %vm389
      %v391 = vsel %vm390, %v383, %v387
      %v392 = vand.u32 2147483647, %v382
      %vm393 = vcmp.eq.f32.partialorder %v392, 8.507059e+37
      %v394 = vand.u32 %v382, 2147483648
      %v395 = vor.u32 1.1754944e-38, %v394
      %v396 = vsel %vm393, %v395, %v391
      %v397 = vmul.f32 1.0, %v396
      %v398 = vld [vmem:[%s5] sm:$0xf]
      %v400 = vperm.slane %v397, 0
      %v402 = vmul.f32 %v398, %v400
      %v403 = vld [vmem:[%s6] sm:$0xf]
      %s405 = vtos %v402
      %v406 = vstv %s405
      %v408 = vmul.f32 %v406, %v279
      %s410 = vtos %v403
      %v411 = vstv %s410
      %v413 = vadd.f32 %v408, %v411
      %414 = vrot.lane.b32.xlu0 %v402, 127
      %v415 = vpop.permute.xlu0 %414
      %s416 = vtos %v415
      %v417 = vstv %s416
      %v419 = vmul.f32 %v417, %v292
      %v420 = vadd.f32 %v413, %v419
      %421 = vrot.lane.b32.xlu0 %v402, 126
      %v422 = vpop.permute.xlu0 %421
      %s423 = vtos %v422
      %v424 = vstv %s423
      %v426 = vmul.f32 %v424, %v304
      %v427 = vadd.f32 %v420, %v426
      %428 = vrot.lane.b32.xlu0 %v402, 125
      %v429 = vpop.permute.xlu0 %428
      %s430 = vtos %v429
      %v431 = vstv %s430
      %v433 = vmul.f32 %v431, %v316
      %v434 = vadd.f32 %v427, %v433
      %435 = vst [vmem:[%s278] sm:$0x3] %v434
      %v436 = vld [vmem:[%s273] sm:$0x3]
      %v437 = vrot.slane %v402, 1
      %s438 = vtos %v437
      %v439 = vstv %s438
      %v441 = vmul.f32 %v439, %v436
      %v442 = vrot.slane %v403, 1
      %s443 = vtos %v442
      %v444 = vstv %s443
      %v446 = vadd.f32 %v441, %v444
      %v447 = vld [vmem:[%s291] sm:$0x3]
      %448 = vrot.lane.b32.xlu0 %v437, 127
      %v449 = vpop.permute.xlu0 %448
      %s450 = vtos %v449
      %v451 = vstv %s450
      %v453 = vmul.f32 %v451, %v447
      %v454 = vadd.f32 %v446, %v453
      %v455 = vld [vmem:[%s303] sm:$0x3]
      %456 = vrot.lane.b32.xlu0 %v437, 126
      %v457 = vpop.permute.xlu0 %456
      %s458 = vtos %v457
      %v459 = vstv %s458
      %v461 = vmul.f32 %v459, %v455
      %v462 = vadd.f32 %v454, %v461
      %v463 = vld [vmem:[%s315] sm:$0x3]
      %464 = vrot.lane.b32.xlu0 %v437, 125
      %v465 = vpop.permute.xlu0 %464
      %s466 = vtos %v465
      %v467 = vstv %s466
      %v469 = vmul.f32 %v467, %v463
      %v470 = vadd.f32 %v462, %v469
      %s471 = scalar_lea.vmem %s278, 2
      %472 = vst [vmem:[%s471] sm:$0x3] %v470
      %v473 = vld [vmem:[%s273] sm:$0x3]
      %v474 = vrot.slane %v402, 2
      %s475 = vtos %v474
      %v476 = vstv %s475
      %v478 = vmul.f32 %v476, %v473
      %v479 = vrot.slane %v403, 2
      %s480 = vtos %v479
      %v481 = vstv %s480
      %v483 = vadd.f32 %v478, %v481
      %v484 = vld [vmem:[%s291] sm:$0x3]
      %485 = vrot.lane.b32.xlu0 %v474, 127
      %v486 = vpop.permute.xlu0 %485
      %s487 = vtos %v486
      %v488 = vstv %s487
      %v490 = vmul.f32 %v488, %v484
      %v491 = vadd.f32 %v483, %v490
      %v492 = vld [vmem:[%s303] sm:$0x3]
      %493 = vrot.lane.b32.xlu0 %v474, 126
      %v494 = vpop.permute.xlu0 %493
      %s495 = vtos %v494
      %v496 = vstv %s495
      %v498 = vmul.f32 %v496, %v492
      %v499 = vadd.f32 %v491, %v498
      %v500 = vld [vmem:[%s315] sm:$0x3]
      %501 = vrot.lane.b32.xlu0 %v474, 125
      %v502 = vpop.permute.xlu0 %501
      %s503 = vtos %v502
      %v504 = vstv %s503
      %v506 = vmul.f32 %v504, %v500
      %v507 = vadd.f32 %v499, %v506
      %s508 = scalar_lea.vmem %s278, 4
      %509 = vst [vmem:[%s508] sm:$0x3] %v507
      %v510 = vld [vmem:[%s273] sm:$0x3]
      %v511 = vrot.slane %v402, 3
      %s512 = vtos %v511
      %v513 = vstv %s512
      %v515 = vmul.f32 %v513, %v510
      %v516 = vrot.slane %v403, 3
      %s517 = vtos %v516
      %v518 = vstv %s517
      %v520 = vadd.f32 %v515, %v518
      %v521 = vld [vmem:[%s291] sm:$0x3]
      %522 = vrot.lane.b32.xlu0 %v511, 127
      %v523 = vpop.permute.xlu0 %522
      %s524 = vtos %v523
      %v525 = vstv %s524
      %v527 = vmul.f32 %v525, %v521
      %v528 = vadd.f32 %v520, %v527
      %v529 = vld [vmem:[%s303] sm:$0x3]
      %530 = vrot.lane.b32.xlu0 %v511, 126
      %v531 = vpop.permute.xlu0 %530
      %s532 = vtos %v531
      %v533 = vstv %s532
      %v535 = vmul.f32 %v533, %v529
      %v536 = vadd.f32 %v528, %v535
      %v537 = vld [vmem:[%s315] sm:$0x3]
      %538 = vrot.lane.b32.xlu0 %v511, 125
      %v539 = vpop.permute.xlu0 %538
      %s540 = vtos %v539
      %v541 = vstv %s540
      %v543 = vmul.f32 %v541, %v537
      %v544 = vadd.f32 %v536, %v543
      %s545 = scalar_lea.vmem %s278, 6
      %546 = vst [vmem:[%s545] sm:$0x3] %v544
      %p547 = scmp.lt.s32.totalorder %s18, 1
      %s548 = scalar_select %p547, %s18, 1
      %s549 = smul.addr %s548, 4
      %s550 = smul.addr %s549, 2
      %s551 = scalar_lea.vmem %s7, %s550
      // Predicated region
      $region49: #{cse_block.1} parent=47 // pred_check
        %p552 = pneg %p188
      $region50: #{cse_block.1} parent=47 // pred_check_branch
        %554 = sbr.rel (%p552) target = $region52
      $region51: #{cse_block.1} parent=47 // pred_region
        _
      $region52: #{cse_block.1} parent=47 // pred_fallthru
        _
    $region48: #{cse_block.1} parent=5 // pred_fallthru
      _
    %p555 = scmp.le.s32.totalorder 2, %s13
    // Predicated region
    $region53: #{cse_block.1} parent=5 // pred_check
      %p556 = pneg %p555
    $region54: #{cse_block.1} parent=5 // pred_check_branch
      %558 = sbr.rel (%p556) target = $region56
    $region55: #{cse_block.1} parent=5 // pred_region
      %s559 = ssub.s32 %s13, 2
      // Predicated region
      $region57: #{cse_block.1} parent=55 // pred_check
        %p560 = pneg %p194
      $region58: #{cse_block.1} parent=55 // pred_check_branch
        %562 = sbr.rel (%p560) target = $region60
      $region59: #{cse_block.1} parent=55 // pred_region
        %p563 = scmp.lt.s32.totalorder %s19, 1
        %s564 = scalar_select %p563, %s19, 1
        %s565 = smul.addr %s564, 4
        %s566 = smul.addr %s565, 2
        %s567 = scalar_lea.vmem %s7, %s566
      $region60: #{cse_block.1} parent=55 // pred_fallthru
        _
    $region56: #{cse_block.1} parent=5 // pred_fallthru
      _
  $region6: #{cse_block.1} parent=0 // loop_footer
    %s17 = sadd.s32 1, %s13
  $region7: #{cse_block.1} parent=0 // loop_footer_branch
    %12 = sbr.rel target = $region3
  $region8: #{cse_block.1} parent=0 // loop_exit
    _

</llo_original>
